<compile_context>
chip_gen: v5e
topology: v5e:2x2
jax: 0.10.0
libtpu: 0.0.40
codegen_flags: <defaults>
</compile_context>

<pallas_src>
import functools

import jax
import jax.numpy as jnp
import numpy as np
from jax.experimental import pallas as pl
from jax.experimental.pallas import tpu as pltpu

EPS = 1e-5  # PyTorch GroupNorm default


@functools.lru_cache(maxsize=None)
def _roll_moves_to_higher_indices() -> bool:
    """Probe pltpu.roll's rotation direction once (tiny kernel, cached).

    Returns True if pltpu.roll follows jnp.roll semantics (positive shift moves
    elements toward higher indices, i.e. result[i] = x[i - shift]).
    Must be called outside jit (it concretizes a scalar).
    """
    def k(x_ref, o_ref):
        o_ref[...] = pltpu.roll(x_ref[...], 1, 1)

    x = jax.lax.broadcasted_iota(jnp.int32, (8, 128), 1)
    y = pl.pallas_call(k, out_shape=jax.ShapeDtypeStruct((8, 128), jnp.int32))(x)
    return int(y[0, 0]) == 127  # jnp.roll convention: result[0] == x[-1]


def _make_kernel(cin, cout, H, W, block_n, g_in, g_out, eps, mm_dtype,
                 roll_to_higher):
    HW = H * W
    cg_in = cin // g_in
    cg_out = cout // g_out

    def lane_shift(h, delta):
        # t[..., i] = h[..., (i + delta) mod HW]; wraparound is masked by caller.
        d = delta % HW
        if d == 0:
            return h
        amount = (HW - d) if roll_to_higher else d
        return pltpu.roll(h, amount, axis=1)

    def gn_silu(xf, gamma, beta, a_gc, a_cg, inv_cnt):
        # GroupNorm (f32 statistics) + SiLU on a lane-dense (C, HW) tile.
        # Group reduce/broadcast uses tiny precomputed indicator matrices
        # (hoisted to the wrapper); negligible vs. the conv matmuls.
        s = jnp.sum(xf, axis=1, keepdims=True)                                 # (C, 1)
        ss = jnp.sum(xf * xf, axis=1, keepdims=True)                           # (C, 1)
        mean_g = jnp.dot(a_gc, s, preferred_element_type=jnp.float32) * inv_cnt   # (G, 1)
        ex2_g = jnp.dot(a_gc, ss, preferred_element_type=jnp.float32) * inv_cnt   # (G, 1)
        # NOTE: E[x^2]-mean^2 in f32 only (stats never run in bf16 here).
        inv_g = jax.lax.rsqrt(ex2_g - mean_g * mean_g + eps)
        mean_c = jnp.dot(a_cg, mean_g, preferred_element_type=jnp.float32)     # (C, 1)
        inv_c = jnp.dot(a_cg, inv_g, preferred_element_type=jnp.float32)       # (C, 1)
        h = (xf - mean_c) * (inv_c * gamma) + beta
        return h * jax.nn.sigmoid(h)                                           # SiLU

    def conv3x3(h, w_flat, bias, row_ids, col_ids):
        # 3x3 conv (padding=1) on a lane-dense (C, HW) tile:
        # 9 rolled + edge-masked taps stacked (sublane-aligned concat) into an
        # im2col patch -> a single MXU matmul with K = 9*C.
        taps = []
        for k in range(9):
            dy, dx = k // 3 - 1, k % 3 - 1
            t = lane_shift(h, dy * W + dx)
            conds = []
            if dy < 0:
                conds.append(row_ids >= -dy)
            if dy > 0:
                conds.append(row_ids < H - dy)
            if dx < 0:
                conds.append(col_ids >= -dx)
            if dx > 0:
                conds.append(col_ids < W - dx)
            if conds:
                valid = conds[0]
                for c in conds[1:]:
                    valid = valid & c
                t = jnp.where(valid, t, jnp.zeros_like(t))
            taps.append(t)
        patch = jnp.concatenate(taps, axis=0)                                  # (9C, HW)
        return jnp.dot(w_flat, patch.astype(mm_dtype),
                       preferred_element_type=jnp.float32) + bias

    def kernel(x_ref, g1, be1, w1, b1, g2, be2, w2, b2, ws, bs,
               agc1, acg1, agc2, acg2, o_ref):
        pos = jax.lax.broadcasted_iota(jnp.int32, (1, HW), 1)
        row_ids = pos // W
        col_ids = pos % W
        for n in range(block_n):  # small static unroll over samples in the block
            xf = x_ref[n].astype(jnp.float32)                                  # (Cin, HW)
            # in_layers: GroupNorm -> SiLU -> Conv3x3(pad=1)
            h1 = gn_silu(xf, g1[...], be1[...], agc1[...], acg1[...],
                         1.0 / (cg_in * HW))
            a1 = conv3x3(h1, w1[...], b1[...], row_ids, col_ids)               # (Cout, HW)
            # out_layers: GroupNorm -> SiLU -> Dropout(identity) -> Conv3x3(pad=1)
            h2 = gn_silu(a1, g2[...], be2[...], agc2[...], acg2[...],
                         1.0 / (cg_out * HW))
            a2 = conv3x3(h2, w2[...], b2[...], row_ids, col_ids)               # (Cout, HW)
            # skip connection: 1x1 conv (channels != out_channels, use_conv=False)
            skip = jnp.dot(ws[...], xf.astype(mm_dtype),
                           preferred_element_type=jnp.float32) + bs[...]
            o_ref[n] = (skip + a2).astype(o_ref.dtype)

    return kernel


def resblock_forward(x, params, *, groups_in, groups_out, block_n=None,
                     use_bf16_matmul=False):
    """x: (N, Cin, H, W) float32. params: dict of float32 arrays (see __main__)."""
    N, cin, H, W = x.shape
    cout = params["b1"].shape[0]
    HW = H * W

    # Samples per grid step (amortize per-step overhead); must divide N.
    if block_n is None:
        block_n = 2
    block_n = max(1, min(block_n, N))
    while N % block_n:
        block_n -= 1

    mm_dtype = jnp.bfloat16 if use_bf16_matmul else jnp.float32

    # im2col weight repack: w[o, i, ky, kx] -> w_flat[o, (ky*3+kx)*C + i]
    w1 = jnp.transpose(params["w1"].reshape(cout, cin, 9), (0, 2, 1)) \
            .reshape(cout, 9 * cin).astype(mm_dtype)
    w2 = jnp.transpose(params["w2"].reshape(cout, cout, 9), (0, 2, 1)) \
            .reshape(cout, 9 * cout).astype(mm_dtype)
    ws = params["ws"].reshape(cout, cin).astype(mm_dtype)
    col = lambda v: v.reshape(-1, 1).astype(jnp.float32)

    def group_mats(C, G):
        # Hoisted GroupNorm group-reduce / group-broadcast indicator matrices.
        m = np.zeros((G, C), np.float32)
        for g in range(G):
            m[g, g * (C // G):(g + 1) * (C // G)] = 1.0
        return jnp.asarray(m), jnp.asarray(np.ascontiguousarray(m.T))

    agc1, acg1 = group_mats(cin, groups_in)
    agc2, acg2 = group_mats(cout, groups_out)

    # Lane-dense layout at the kernel boundary: (N, C, H*W).
    x_flat = x.reshape(N, cin, HW)

    inputs = (x_flat,
              col(params["g1"]), col(params["be1"]), w1, col(params["b1"]),
              col(params["g2"]), col(params["be2"]), w2, col(params["b2"]),
              ws, col(params["bs"]),
              agc1, acg1, agc2, acg2)

    def full_spec(arr):
        nd = arr.ndim
        return pl.BlockSpec(arr.shape, lambda n, _nd=nd: (0,) * _nd)

    kernel = _make_kernel(cin, cout, H, W, block_n, groups_in, groups_out, EPS,
                          mm_dtype, _roll_moves_to_higher_indices())

    out = pl.pallas_call(
        kernel,
        out_shape=jax.ShapeDtypeStruct((N, cout, HW), x.dtype),
        grid_spec=pltpu.PrefetchScalarGridSpec(
            num_scalar_prefetch=0,
            grid=(N // block_n,),
            in_specs=[pl.BlockSpec((block_n, cin, HW), lambda n: (n, 0, 0))]
                     + [full_spec(a) for a in inputs[1:]],
            out_specs=pl.BlockSpec((block_n, cout, HW), lambda n: (n, 0, 0)),
        ),
        compiler_params=pltpu.CompilerParams(dimension_semantics=("parallel",)),
    )(*inputs)
    return out.reshape(N, cout, H, W)


# ---------------- pure-JAX reference (for verification) ----------------
def _ref_forward(x, p, groups_in, groups_out):
    def gn(x, g, b, groups):
        N, C, H, W = x.shape
        xr = x.reshape(N, groups, C // groups, H, W)
        m = xr.mean(axis=(2, 3, 4), keepdims=True)
        v = xr.var(axis=(2, 3, 4), keepdims=True)
        xn = ((xr - m) / jnp.sqrt(v + EPS)).reshape(N, C, H, W)
        return xn * g[None, :, None, None] + b[None, :, None, None]

    def silu(x):
        return x * jax.nn.sigmoid(x)

    def conv(x, w, b, pad):
        y = jax.lax.conv_general_dilated(
            x, w, (1, 1), [(pad, pad), (pad, pad)],
            dimension_numbers=("NCHW", "OIHW", "NCHW"))
        return y + b[None, :, None, None]

    h = conv(silu(gn(x, p["g1"], p["be1"], groups_in)), p["w1"], p["b1"], 1)
    h = conv(silu(gn(h, p["g2"], p["be2"], groups_out)), p["w2"], p["b2"], 1)
    skip = conv(x, p["ws"], p["bs"], 0)
    return skip + h


if __name__ == "__main__":
    # ResBlock(channels=8, dropout=0.0, out_channels=16, use_conv=False, dims=2,
    #          group_layer_num_in=4, group_layer_num_out=4)
    N, CIN, COUT, H, W = 2, 8, 16, 16, 16
    G_IN, G_OUT = 4, 4

    key = jax.random.PRNGKey(0)
    ks = jax.random.split(key, 10)
    params = {
        # in_layers
        "g1": 1.0 + 0.1 * jax.random.normal(ks[0], (CIN,), jnp.float32),
        "be1": 0.1 * jax.random.normal(ks[1], (CIN,), jnp.float32),
        "w1": 0.1 * jax.random.normal(ks[2], (COUT, CIN, 3, 3), jnp.float32),
        "b1": 0.1 * jax.random.normal(ks[3], (COUT,), jnp.float32),
        # out_layers (module zero-inits this conv; use random weights here so
        # the second conv's tap indexing is actually exercised by the test)
        "g2": 1.0 + 0.1 * jax.random.normal(ks[4], (COUT,), jnp.float32),
        "be2": 0.1 * jax.random.normal(ks[5], (COUT,), jnp.float32),
        "w2": 0.1 * jax.random.normal(ks[6], (COUT, COUT, 3, 3), jnp.float32),
        "b2": 0.05 * jax.random.normal(ks[7], (COUT,), jnp.float32),
        # skip connection: 1x1 conv
        "ws": 0.1 * jax.random.normal(ks[8], (COUT, CIN, 1, 1), jnp.float32),
        "bs": 0.1 * jax.random.normal(ks[9], (COUT,), jnp.float32),
    }
    x = jax.random.normal(jax.random.PRNGKey(1), (N, CIN, H, W), jnp.float32)

    # f32 matmul path, random w2 (every conv tap exercised).
    out = jax.block_until_ready(
        resblock_forward(x, params, groups_in=G_IN, groups_out=G_OUT))
    ref = jax.block_until_ready(_ref_forward(x, params, G_IN, G_OUT))
    np.testing.assert_allclose(np.asarray(out), np.asarray(ref),
                               rtol=2e-4, atol=2e-4)

    # Module-faithful init (zero_module'd second conv); reuses the same compiled kernel.
    p0 = dict(params, w2=jnp.zeros_like(params["w2"]),
              b2=jnp.zeros_like(params["b2"]))
    out0 = jax.block_until_ready(
        resblock_forward(x, p0, groups_in=G_IN, groups_out=G_OUT))
    ref0 = jax.block_until_ready(_ref_forward(x, p0, G_IN, G_OUT))
    np.testing.assert_allclose(np.asarray(out0), np.asarray(ref0),
                               rtol=2e-4, atol=2e-4)

    # bf16 MXU-operand path (f32 accumulation, f32 GroupNorm stats), looser tolerance.
    outb = jax.block_until_ready(
        resblock_forward(x, params, groups_in=G_IN, groups_out=G_OUT,
                         use_bf16_matmul=True))
    np.testing.assert_allclose(np.asarray(outb), np.asarray(ref),
                               rtol=5e-2, atol=5e-2)

    print("KERNEL_OK")
</pallas_src>

<mosaic_0001>
module attributes {stable_mosaic.version = 11 : i64} {
  func.func @k(%arg0: memref<8x128xi32, #tpu.memory_space<vmem>>, %arg1: memref<8x128xi32, #tpu.memory_space<vmem>>) attributes {dimension_semantics = [], scalar_prefetch = 0 : i64, scratch_operands = 0 : i64, tpu.core_type = #tpu.core_type<tc>} {
    %c0 = arith.constant 0 : index
    %c0_0 = arith.constant 0 : index
    %0 = vector.load %arg0[%c0, %c0_0] : memref<8x128xi32, #tpu.memory_space<vmem>>, vector<8x128xi32>
    %c1_i32 = arith.constant 1 : i32
    %1 = tpu.dynamic_rotate %0 by %c1_i32 dim 1 : vector<8x128xi32>, i32 -> vector<8x128xi32>
    %c0_1 = arith.constant 0 : index
    %c0_2 = arith.constant 0 : index
    %2 = vector.load %arg1[%c0_1, %c0_2] : memref<8x128xi32, #tpu.memory_space<vmem>>, vector<8x128xi32>
    tpu.vector_store %arg1[%c0_1, %c0_2], %1 {strides = array<i32>} : memref<8x128xi32, #tpu.memory_space<vmem>>, vector<8x128xi32>,
    return
  }
}

</mosaic_0001>

<llo_original>
// kernel: tpu_custom_call.1
$region0: #{tpu_custom_call.1}
  #allocation0 [shape = 'u32[]', space=smem, size = 0x4, offset = 0x4, fixed_abs, tag = 'smem constant byte address 0x4 - core index']
  #allocation1 [shape = 'u32[72,128]{1,0:T(1,128)}', space=vmem, size = 0x9000, scoped, tag = 'internal scratch']
  %s0 = inlined_call_operand.hbm [shape: s32[8,128], index: 0, kind: input, shape index: {}]
  %s1 = inlined_call_operand.hbm [shape: s32[8,128], index: 1, kind: output, shape index: {}]
  %s2 = sld [smem:[#allocation0]]
  $region18: #{tpu_custom_call.1} parent=0
    _
  %s4 = ssub.s32 1, %s2
  %s5 = scalar_select 0, %s4, %s2
  $region1: #{tpu_custom_call.1} parent=0
    #allocation2 [shape = 'u8[4096]{0}', space=vmem, size = 0x1000, scoped, tag = 'input window, operand 0, single buffered']
    #allocation3 [shape = 's32[1]{0}', space=sflag, size = 0x4, scoped, tag = 'scoped memory for tpu_custom_call.1']
    #allocation4 [shape = 's32[1]{0}', space=sflag, size = 0x4, scoped, tag = 'scoped memory for tpu_custom_call.1']
    #allocation5 [shape = 'u8[4096]{0}', space=vmem, size = 0x1000, scoped, tag = 'output window, operand 0, single buffered']
    %6 = vsyncpa [#allocation3], 0
    %7 = vsyncpa [#allocation4], 0
    // Predicated region
    $region2: #{tpu_custom_call.1} parent=1 // pred_check
      _
    $region3: #{tpu_custom_call.1} parent=1 // pred_check_branch
      %9 = sbr.rel (0) target = $region5
    $region4: #{tpu_custom_call.1} parent=1 // pred_region
      %11 = vsyncadd [#allocation3], 0
      %s13 = sshll.u32 %s0, 4
      %s14 = int_to_ptr.hbm [resolvable:$true] %s13
      %s15 = sshll.u32 [#allocation2], 4
      %s16 = int_to_ptr.vmem [resolvable:$true] %s15
      %18 = dma.hbm_to_vmem [thread:$0]  %s14, 128, %s16, [#allocation3]
    $region5: #{tpu_custom_call.1} parent=1 // pred_fallthru
      _
    // Predicated region
    $region6: #{tpu_custom_call.1} parent=1 // pred_check
      _
    $region7: #{tpu_custom_call.1} parent=1 // pred_check_branch
      %20 = sbr.rel (0) target = $region9
    $region8: #{tpu_custom_call.1} parent=1 // pred_region
      %22 = dma.done [#allocation3], 128
    $region9: #{tpu_custom_call.1} parent=1 // pred_fallthru
      _
    %v23 = vld [vmem:[#allocation2] sm:$0xff]
    %24 = vrot.lane.b32.xlu0 %v23, 1
    %v25 = vpop.permute.xlu0 %24
    %26 = vst [vmem:[#allocation5] sm:$0xff] %v25
    // Predicated region
    $region10: #{tpu_custom_call.1} parent=1 // pred_check
      _
    $region11: #{tpu_custom_call.1} parent=1 // pred_check_branch
      %28 = sbr.rel (0) target = $region13
    $region12: #{tpu_custom_call.1} parent=1 // pred_region
      %30 = vsyncadd [#allocation4], 0
      %s32 = sshll.u32 [#allocation5], 4
      %s33 = int_to_ptr.vmem [resolvable:$true] %s32
      %s34 = sshll.u32 %s1, 4
      %s35 = int_to_ptr.hbm [resolvable:$true] %s34
      %37 = dma.vmem_to_hbm [thread:$0]  %s33, 128, %s35, [#allocation4]
    $region13: #{tpu_custom_call.1} parent=1 // pred_fallthru
      _
    // Predicated region
    $region14: #{tpu_custom_call.1} parent=1 // pred_check
      _
    $region15: #{tpu_custom_call.1} parent=1 // pred_check_branch
      %39 = sbr.rel (0) target = $region17
    $region16: #{tpu_custom_call.1} parent=1 // pred_region
      %41 = dma.done [#allocation4], 128
    $region17: #{tpu_custom_call.1} parent=1 // pred_fallthru
      _
    %42 = vsyncpa [#allocation3], 1
    %43 = vsyncpa [#allocation4], 1

</llo_original>
